<compile_context>
chip_gen: v6e
topology: v6e:2x2x1
jax: 0.10.0
libtpu: 0.0.40
codegen_flags: <defaults>
</compile_context>

<pallas_src>
import jax
import jax.numpy as jnp
from jax.experimental import pallas as pl
from jax.experimental.pallas import tpu as pltpu


def _upsample_fused_kernel(x_ref, w_ref, b_ref, a_ref, o_ref):
    # x_ref: (1, H+2, W+2, Cin)       zero-padded input image (resident across H tiles)
    # w_ref: (9*Cin, s*s*Cout)        bf16 im2col weights; cols ordered (i, j, c)
    # b_ref: (1, s*s*Cout)            f32 bias, same column ordering
    # a_ref: (1,)                     f32 PReLU alpha (SMEM scalar)
    # o_ref: (1, TH, s, W, s*Cout)    fused conv + pixel-shuffle output tile
    t = pl.program_id(1)
    th = o_ref.shape[1]
    s = o_ref.shape[2]
    w_out = o_ref.shape[3]
    sc = o_ref.shape[4]            # s * Cout

    row0 = pl.multiple_of(t * th, th)

    # Build the im2col patch once per tile: (TH, W, 9*Cin), columns ordered
    # (tap k = dy*3 + dx, cin) to match the weight row ordering.
    slabs = []
    for dy in range(3):
        rows = x_ref[0, pl.ds(row0 + dy, th), :, :]        # (TH, W+2, Cin)
        for dx in range(3):
            slabs.append(rows[:, dx:dx + w_out, :])        # (TH, W, Cin)
    patch = jnp.concatenate(slabs, axis=-1).astype(jnp.bfloat16)  # (TH, W, 9*Cin)

    # Single matmul: all s^2*Cout conv output channels in one MXU pass.
    acc = jnp.einsum("hwk,ko->hwo", patch, w_ref[...],
                     preferred_element_type=jnp.float32)          # (TH, W, s*s*Cout) f32
    acc = acc + b_ref[0]                                          # bias broadcast
    alpha = a_ref[0]
    acc = jnp.where(acc >= 0.0, acc, alpha * acc)                 # PReLU (shared alpha)

    # Pixel shuffle's row interleave i is handled by the output layout; the
    # column (j, c) interleave is already in the matmul column ordering.
    for i in range(s):  # static unroll over the s sub-rows
        o_ref[0, :, i, :, :] = acc[:, :, i * sc:(i + 1) * sc].astype(o_ref.dtype)


def upsample_block(x_nchw, weight, bias, alpha, scale_factor=2, block_h=None):
    """Forward pass of UpsampleBlock.

    x_nchw : (N, Cin, H, W)          float32
    weight : (Cout*s^2, Cin, 3, 3)   PyTorch Conv2d weight layout
    bias   : (Cout*s^2,)
    alpha  : scalar PReLU parameter (PyTorch default num_parameters=1)
    returns: (N, Cout, H*s, W*s)
    """
    N, cin, H, W = x_nchw.shape
    cc = weight.shape[0]
    s = int(scale_factor)
    cout = cc // (s * s)
    assert cout * s * s == cc

    if block_h is None:
        block_h = 1
        for cand in (64, 32, 16, 8, 4, 2, 1):
            if H % cand == 0:
                block_h = cand
                break
    th = block_h
    assert H % th == 0
    n_tiles = H // th

    # NCHW -> NHWC + 1-pixel zero halo (single fused XLA pass over the input).
    x = jnp.transpose(x_nchw, (0, 2, 3, 1)).astype(jnp.float32)
    xp = jnp.pad(x, ((0, 0), (1, 1), (1, 1), (0, 0)))
    # TODO(synk): for very large H the whole padded image sits in VMEM; switch the
    # input to memory_space=pl.ANY + manual halo DMA per H tile to bound it too.

    # Conv weight (cc, Cin, 3, 3), oc = c*s^2 + i*s + j  ->  (9*Cin, s^2*cout):
    # rows ordered (tap k = ky*3 + kx, cin), columns ordered (i, j, c).  bf16 for MXU.
    w_mat = jnp.transpose(weight, (2, 3, 1, 0)).reshape(9 * cin, cc)
    w2 = (jnp.transpose(w_mat.reshape(9 * cin, cout, s, s), (0, 2, 3, 1))
          .reshape(9 * cin, s * s * cout).astype(jnp.bfloat16))
    b2 = (jnp.transpose(bias.reshape(cout, s, s), (1, 2, 0))
          .reshape(1, s * s * cout).astype(jnp.float32))
    a1 = jnp.asarray(alpha, jnp.float32).reshape(1)

    out5 = pl.pallas_call(
        _upsample_fused_kernel,
        out_shape=jax.ShapeDtypeStruct((N, H, s, W, s * cout), jnp.float32),
        grid_spec=pltpu.PrefetchScalarGridSpec(
            num_scalar_prefetch=0,
            grid=(N, n_tiles),
            in_specs=[
                pl.BlockSpec((1, H + 2, W + 2, cin), lambda n, t: (n, 0, 0, 0)),
                pl.BlockSpec((9 * cin, s * s * cout), lambda n, t: (0, 0)),
                pl.BlockSpec((1, s * s * cout), lambda n, t: (0, 0)),
                pl.BlockSpec(memory_space=pltpu.MemorySpace.SMEM),
            ],
            out_specs=pl.BlockSpec((1, th, s, W, s * cout),
                                   lambda n, t: (n, t, 0, 0, 0)),
        ),
        compiler_params=pltpu.CompilerParams(
            dimension_semantics=("parallel", "parallel"),
            vmem_limit_bytes=32 * 1024 * 1024),
    )(xp, w2, b2, a1)

    # PixelShuffle already performed by the kernel's column ordering + output
    # layout: (N, H, s, W, s*cout) row-major == (N, H*s, W*s, cout).  Free reshape.
    out_nhwc = out5.reshape(N, H * s, W * s, cout)
    return jnp.transpose(out_nhwc, (0, 3, 1, 2))


def _reference_upsample(x, weight, bias, alpha, s):
    """Pure-JAX reference: Conv2d(pad=1) -> PixelShuffle(s) -> PReLU."""
    conv = jax.lax.conv_general_dilated(
        x, weight, window_strides=(1, 1), padding=((1, 1), (1, 1)),
        dimension_numbers=("NCHW", "OIHW", "NCHW"))
    conv = conv + bias[None, :, None, None]
    N, C, H, W = conv.shape
    c = C // (s * s)
    ps = conv.reshape(N, c, s, s, H, W)
    ps = jnp.transpose(ps, (0, 1, 4, 2, 5, 3)).reshape(N, c, H * s, W * s)
    return jnp.where(ps >= 0.0, ps, alpha * ps)


if __name__ == "__main__":
    # Small deterministic config: batch=2, in_channels=4, out_channels=4,
    # spatial 16x16, scale_factor=2.
    N, Cin, H, W = 2, 4, 16, 16
    Cout, scale = 4, 2
    cout_conv = Cout * scale ** 2

    key = jax.random.PRNGKey(0)
    k_x, k_w, k_b = jax.random.split(key, 3)

    x = jax.random.normal(k_x, (N, Cin, H, W), jnp.float32)
    weight = 0.1 * jax.random.normal(k_w, (cout_conv, Cin, 3, 3), jnp.float32)
    bias = 0.05 * jax.random.normal(k_b, (cout_conv,), jnp.float32)
    alpha = jnp.float32(0.25)  # PyTorch PReLU default init

    out = upsample_block(x, weight, bias, alpha, scale_factor=scale, block_h=8)
    jax.block_until_ready(out)
    assert out.shape == (N, Cout, H * scale, W * scale), out.shape

    # Numerical sanity check against the pure-JAX reference (bf16 matmul
    # operands, f32 accumulate => loose tolerance).
    ref = _reference_upsample(x, weight, bias, alpha, scale)
    max_err = float(jnp.max(jnp.abs(out - ref)))
    assert max_err < 5e-2, f"max abs err {max_err}"

    print("KERNEL_OK")
</pallas_src>

<mosaic_0001>
module attributes {stable_mosaic.version = 11 : i64} {
  func.func @_upsample_fused_kernel(%arg0: i32, %arg1: i32, %arg2: memref<1x18x18x4xf32, #tpu.memory_space<vmem>>, %arg3: memref<36x16xbf16, #tpu.memory_space<vmem>>, %arg4: memref<1x16xf32, #tpu.memory_space<vmem>>, %arg5: memref<1xf32, #tpu.memory_space<smem>>, %arg6: memref<1x8x2x16x8xf32, #tpu.memory_space<vmem>>) attributes {dimension_semantics = [#tpu.dimension_semantics<parallel>, #tpu.dimension_semantics<parallel>], iteration_bounds = array<i64: 2, 2>, scalar_prefetch = 0 : i64, scratch_operands = 0 : i64, tpu.core_type = #tpu.core_type<tc>, window_params = [{transform_indices = @transform_0, window_bounds = array<i64: 1, 18, 18, 4>}, {pipeline_mode = #tpu.pipeline_mode<synchronous>, transform_indices = @transform_1, window_bounds = array<i64: 36, 16>}, {pipeline_mode = #tpu.pipeline_mode<synchronous>, transform_indices = @transform_2, window_bounds = array<i64: 1, 16>}, {transform_indices = @transform_3, window_bounds = array<i64: 1>}, {transform_indices = @transform_4, window_bounds = array<i64: 1, 8, 2, 16, 8>}]} {
    %c8_i32 = arith.constant 8 : i32
    %0 = arith.muli %arg1, %c8_i32 : i32
    %1 = tpu.assume_multiple %0, 8 : i32
    %c0_i32 = arith.constant 0 : i32
    %2 = arith.addi %1, %c0_i32 : i32
    %c0 = arith.constant 0 : index
    %3 = arith.index_cast %2 : i32 to index
    %c0_0 = arith.constant 0 : index
    %c0_1 = arith.constant 0 : index
    %4 = vector.load %arg2[%c0, %3, %c0_0, %c0_1] : memref<1x18x18x4xf32, #tpu.memory_space<vmem>>, vector<1x8x18x4xf32>
    %5 = vector.shape_cast %4 : vector<1x8x18x4xf32> to vector<8x18x4xf32>
    %6 = vector.extract_strided_slice %5 {offsets = [0, 0, 0], sizes = [8, 16, 4], strides = [1, 1, 1]} : vector<8x18x4xf32> to vector<8x16x4xf32>
    %7 = vector.extract_strided_slice %5 {offsets = [0, 1, 0], sizes = [8, 16, 4], strides = [1, 1, 1]} : vector<8x18x4xf32> to vector<8x16x4xf32>
    %8 = vector.extract_strided_slice %5 {offsets = [0, 2, 0], sizes = [8, 16, 4], strides = [1, 1, 1]} : vector<8x18x4xf32> to vector<8x16x4xf32>
    %c1_i32 = arith.constant 1 : i32
    %9 = arith.addi %1, %c1_i32 : i32
    %c0_2 = arith.constant 0 : index
    %10 = arith.index_cast %9 : i32 to index
    %c0_3 = arith.constant 0 : index
    %c0_4 = arith.constant 0 : index
    %11 = vector.load %arg2[%c0_2, %10, %c0_3, %c0_4] : memref<1x18x18x4xf32, #tpu.memory_space<vmem>>, vector<1x8x18x4xf32>
    %12 = vector.shape_cast %11 : vector<1x8x18x4xf32> to vector<8x18x4xf32>
    %13 = vector.extract_strided_slice %12 {offsets = [0, 0, 0], sizes = [8, 16, 4], strides = [1, 1, 1]} : vector<8x18x4xf32> to vector<8x16x4xf32>
    %14 = vector.extract_strided_slice %12 {offsets = [0, 1, 0], sizes = [8, 16, 4], strides = [1, 1, 1]} : vector<8x18x4xf32> to vector<8x16x4xf32>
    %15 = vector.extract_strided_slice %12 {offsets = [0, 2, 0], sizes = [8, 16, 4], strides = [1, 1, 1]} : vector<8x18x4xf32> to vector<8x16x4xf32>
    %c2_i32 = arith.constant 2 : i32
    %16 = arith.addi %1, %c2_i32 : i32
    %c0_5 = arith.constant 0 : index
    %17 = arith.index_cast %16 : i32 to index
    %c0_6 = arith.constant 0 : index
    %c0_7 = arith.constant 0 : index
    %18 = vector.load %arg2[%c0_5, %17, %c0_6, %c0_7] : memref<1x18x18x4xf32, #tpu.memory_space<vmem>>, vector<1x8x18x4xf32>
    %19 = vector.shape_cast %18 : vector<1x8x18x4xf32> to vector<8x18x4xf32>
    %20 = vector.extract_strided_slice %19 {offsets = [0, 0, 0], sizes = [8, 16, 4], strides = [1, 1, 1]} : vector<8x18x4xf32> to vector<8x16x4xf32>
    %21 = vector.extract_strided_slice %19 {offsets = [0, 1, 0], sizes = [8, 16, 4], strides = [1, 1, 1]} : vector<8x18x4xf32> to vector<8x16x4xf32>
    %22 = vector.extract_strided_slice %19 {offsets = [0, 2, 0], sizes = [8, 16, 4], strides = [1, 1, 1]} : vector<8x18x4xf32> to vector<8x16x4xf32>
    %23 = tpu.concatenate %6, %7, %8, %13, %14, %15, %20, %21, %22 in 2 : vector<8x16x4xf32>, vector<8x16x4xf32>, vector<8x16x4xf32>, vector<8x16x4xf32>, vector<8x16x4xf32>, vector<8x16x4xf32>, vector<8x16x4xf32>, vector<8x16x4xf32>, vector<8x16x4xf32> -> vector<8x16x36xf32>
    %24 = arith.truncf %23 : vector<8x16x36xf32> to vector<8x16x36xbf16>
    %c0_8 = arith.constant 0 : index
    %c0_9 = arith.constant 0 : index
    %25 = vector.load %arg3[%c0_8, %c0_9] : memref<36x16xbf16, #tpu.memory_space<vmem>>, vector<36x16xbf16>
    "tpu.trace_start"() <{level = 10 : i32, message = "hwk,ko->hwo"}> : () -> ()
    %cst = arith.constant dense<0.000000e+00> : vector<8x16x16xf32>
    %26 = tpu.matmul %24, %25, %cst {dimension_numbers = #tpu.dot_dimension_numbers<[2], [0], [0, 1], [1], [0, 0, 0, 1, 1, 1], [], []>} : vector<8x16x36xbf16>, vector<36x16xbf16>, vector<8x16x16xf32> -> vector<8x16x16xf32>
    "tpu.trace_stop"() : () -> ()
    %c0_10 = arith.constant 0 : index
    %c0_11 = arith.constant 0 : index
    %27 = vector.load %arg4[%c0_10, %c0_11] : memref<1x16xf32, #tpu.memory_space<vmem>>, vector<1x16xf32>
    %28 = vector.shape_cast %27 : vector<1x16xf32> to vector<16xf32>
    %29 = vector.shape_cast %28 : vector<16xf32> to vector<1x1x16xf32>
    %30 = vector.broadcast %29 : vector<1x1x16xf32> to vector<8x16x16xf32>
    %31 = arith.addf %26, %30 : vector<8x16x16xf32>
    %c0_12 = arith.constant 0 : index
    %32 = memref.load %arg5[%c0_12] : memref<1xf32, #tpu.memory_space<smem>>
    %cst_13 = arith.constant 0.000000e+00 : f32
    %33 = vector.broadcast %cst_13 : f32 to vector<8x16x16xf32>
    %34 = arith.cmpf oge, %31, %33 : vector<8x16x16xf32>
    %35 = vector.broadcast %32 : f32 to vector<8x16x16xf32>
    %36 = arith.mulf %35, %31 : vector<8x16x16xf32>
    %37 = arith.select %34, %31, %36 : vector<8x16x16xi1>, vector<8x16x16xf32>
    %38 = vector.extract_strided_slice %37 {offsets = [0, 0, 0], sizes = [8, 16, 8], strides = [1, 1, 1]} : vector<8x16x16xf32> to vector<8x16x8xf32>
    %c0_14 = arith.constant 0 : index
    %c0_15 = arith.constant 0 : index
    %c0_16 = arith.constant 0 : index
    %c0_17 = arith.constant 0 : index
    %c0_18 = arith.constant 0 : index
    %39 = vector.load %arg6[%c0_14, %c0_15, %c0_16, %c0_17, %c0_18] : memref<1x8x2x16x8xf32, #tpu.memory_space<vmem>>, vector<1x8x1x16x8xf32>
    %40 = vector.shape_cast %39 : vector<1x8x1x16x8xf32> to vector<8x16x8xf32>
    %41 = vector.shape_cast %38 : vector<8x16x8xf32> to vector<1x8x1x16x8xf32>
    tpu.vector_store %arg6[%c0_14, %c0_15, %c0_16, %c0_17, %c0_18], %41 {strides = array<i32>} : memref<1x8x2x16x8xf32, #tpu.memory_space<vmem>>, vector<1x8x1x16x8xf32>,
    %42 = vector.extract_strided_slice %37 {offsets = [0, 0, 8], sizes = [8, 16, 8], strides = [1, 1, 1]} : vector<8x16x16xf32> to vector<8x16x8xf32>
    %c0_19 = arith.constant 0 : index
    %c0_20 = arith.constant 0 : index
    %c1 = arith.constant 1 : index
    %c0_21 = arith.constant 0 : index
    %c0_22 = arith.constant 0 : index
    %43 = vector.load %arg6[%c0_19, %c0_20, %c1, %c0_21, %c0_22] : memref<1x8x2x16x8xf32, #tpu.memory_space<vmem>>, vector<1x8x1x16x8xf32>
    %44 = vector.shape_cast %43 : vector<1x8x1x16x8xf32> to vector<8x16x8xf32>
    %45 = vector.shape_cast %42 : vector<8x16x8xf32> to vector<1x8x1x16x8xf32>
    tpu.vector_store %arg6[%c0_19, %c0_20, %c1, %c0_21, %c0_22], %45 {strides = array<i32>} : memref<1x8x2x16x8xf32, #tpu.memory_space<vmem>>, vector<1x8x1x16x8xf32>,
    return
  }
  func.func @transform_0(%arg0: i32, %arg1: i32) -> (i32, i32, i32, i32) {
    %c0_i32 = arith.constant 0 : i32
    %c0_i32_0 = arith.constant 0 : i32
    %c0_i32_1 = arith.constant 0 : i32
    %c0_i32_2 = arith.constant 0 : i32
    return %arg0, %c0_i32, %c0_i32_0, %c0_i32_1 : i32, i32, i32, i32
  }
  func.func @transform_1(%arg0: i32, %arg1: i32) -> (i32, i32) {
    %c0_i32 = arith.constant 0 : i32
    %c0_i32_0 = arith.constant 0 : i32
    %c0_i32_1 = arith.constant 0 : i32
    return %c0_i32, %c0_i32_0 : i32, i32
  }
  func.func @transform_2(%arg0: i32, %arg1: i32) -> (i32, i32) {
    %c0_i32 = arith.constant 0 : i32
    %c0_i32_0 = arith.constant 0 : i32
    %c0_i32_1 = arith.constant 0 : i32
    return %c0_i32, %c0_i32_0 : i32, i32
  }
  func.func @transform_3(%arg0: i32, %arg1: i32) -> i32 {
    %c0_i32 = arith.constant 0 : i32
    %c0_i32_0 = arith.constant 0 : i32
    return %c0_i32 : i32
  }
  func.func @transform_4(%arg0: i32, %arg1: i32) -> (i32, i32, i32, i32, i32) {
    %c0_i32 = arith.constant 0 : i32
    %c0_i32_0 = arith.constant 0 : i32
    %c0_i32_1 = arith.constant 0 : i32
    %c0_i32_2 = arith.constant 0 : i32
    return %arg0, %arg1, %c0_i32, %c0_i32_0, %c0_i32_1 : i32, i32, i32, i32, i32
  }
}

</mosaic_0001>

<llo_original>
// kernel: tpu_custom_call.1
$region0: #{tpu_custom_call.1}
  #allocation0 [shape = 'u32[]', space=smem, size = 0x4, offset = 0x4, fixed_abs, tag = 'smem constant byte address 0x4 - core index']
  #allocation1 [shape = 'u32[144,128]{1,0:T(1,128)}', space=vmem, size = 0x12000, scoped, tag = 'internal scratch']
  #allocation2 [shape = 'f32[1]{0:T(128)S(6)}', space=smem, size = 0x200, scoped, tag = 'scoped memory for tpu_custom_call.1']
  %s0 = inlined_call_operand.vmem [shape: f32[2,18,18,4], index: 0, kind: input, shape index: {}]
  %s1 = inlined_call_operand.vmem [shape: bf16[36,16], index: 1, kind: input, shape index: {}]
  %s2 = inlined_call_operand.vmem [shape: f32[1,16], index: 2, kind: input, shape index: {}]
  %s3 = inlined_call_operand.<no memory space> [shape: f32[1], index: 3, kind: input, shape index: {}]
  %s4 = inlined_call_operand.vmem [shape: f32[2,16,2,16,8], index: 4, kind: output, shape index: {}]
  %s5 = sld [smem:[#allocation0]]
  $region49: #{tpu_custom_call.1} parent=0
    _
  %s7 = ssub.s32 1, %s5
  %s8 = scalar_select 0, %s7, %s5
  %9 = sst [smem:[#allocation2]] %s3
  loop: start=0, step=1, limit=6
  $region2: #{tpu_custom_call.1} parent=0 // loop_pre_header
    _
  $region3: #{tpu_custom_call.1} parent=0 // loop_header
    %s11 = sphi 0, %s15
    %p12 = scmp.ge.s32.totalorder %s11, 6
    %s18 = sphi 0, %s30
    %s19 = sphi 0, %s26
    %s20 = sphi 0, %s18
    %s21 = sphi 0, %s19
    %s22 = sphi 0, %s20
    %s23 = sphi 0, %s21
    %s33 = sphi 0, %s35
    %s36 = sphi 0, %s33
    %s37 = sphi 0, %s36
    %s53 = sphi 0, %s37
    %s57 = sphi 0, %s57
    %s59 = sphi 0, %s57
    %s60 = sphi 0, %s59
    %s74 = sphi 0, %s60
    %s78 = sphi 0, %s78
    %s80 = sphi 0, %s78
    %s81 = sphi 0, %s80
    %s95 = sphi 0, %s81
    %s99 = sphi 0, %s99
    %s101 = sphi 0, %s99
    %s102 = sphi 0, %s101
    %s116 = sphi 0, %s102
    %s124 = sphi 0, %s126
    %s127 = sphi 0, %s124
    %s128 = sphi 0, %s127
    %s144 = sphi 0, %s128
  $region4: #{tpu_custom_call.1} parent=0 // loop_header_branch
    %14 = sbr.rel (%p12) target = $region8
  $region5: #{tpu_custom_call.1} parent=0 // loop_body
    %s16 = ssub.s32 %s11, 1
    %s17 = ssub.s32 %s11, 2
    %s24 = sadd.s32 1, %s19
    %p25 = scmp.ge.s32.totalorder %s24, 2
    %s26 = scalar_select %p25, 0, %s24
    %s27 = sadd.s32 1, %s18
    %s28 = scalar_select %p25, %s27, %s18
    %p29 = scmp.ge.s32.totalorder %s28, 2
    %s30 = scalar_select %p29, 0, %s28
    %s31 = ssub.s32 %s18, %s30
    %p32 = scmp.eq.s32.totalorder %s31, 0
    %s34 = sadd.s32 %s33, 1
    %s35 = scalar_select %p32, %s33, %s34
    %p38 = pneg %p32
    %p39 = scmp.eq.s32.totalorder %s11, 3
    %p40 = por %p38, %p39
    %p41 = scmp.ne.s32.totalorder %s33, %s36
    %p42 = scmp.eq.s32.totalorder %s11, 0
    %p43 = por %p41, %p42
    %p44 = scmp.ne.s32.totalorder %s33, %s36
    %p45 = scmp.eq.s32.totalorder %s16, 3
    %p46 = por %p44, %p45
    %p47 = scmp.ne.s32.totalorder %s36, %s37
    %p48 = scmp.eq.s32.totalorder %s16, 0
    %p49 = por %p47, %p48
    %p50 = scmp.ne.s32.totalorder %s36, %s37
    %p51 = scmp.eq.s32.totalorder %s17, 3
    %p52 = por %p50, %p51
    %p54 = scmp.ne.s32.totalorder %s37, %s53
    %p55 = scmp.eq.s32.totalorder %s17, 0
    %p56 = por %p54, %p55
    %s58 = sadd.s32 %s57, 1
    %p61 = scmp.eq.s32.totalorder %s11, 3
    %p62 = scmp.ne.s32.totalorder %s57, %s59
    %p63 = scmp.eq.s32.totalorder %s11, 0
    %p64 = por %p62, %p63
    %p65 = scmp.ne.s32.totalorder %s57, %s59
    %p66 = scmp.eq.s32.totalorder %s16, 3
    %p67 = por %p65, %p66
    %p68 = scmp.ne.s32.totalorder %s59, %s60
    %p69 = scmp.eq.s32.totalorder %s16, 0
    %p70 = por %p68, %p69
    %p71 = scmp.ne.s32.totalorder %s59, %s60
    %p72 = scmp.eq.s32.totalorder %s17, 3
    %p73 = por %p71, %p72
    %p75 = scmp.ne.s32.totalorder %s60, %s74
    %p76 = scmp.eq.s32.totalorder %s17, 0
    %p77 = por %p75, %p76
    %s79 = sadd.s32 %s78, 1
    %p82 = scmp.eq.s32.totalorder %s11, 3
    %p83 = scmp.ne.s32.totalorder %s78, %s80
    %p84 = scmp.eq.s32.totalorder %s11, 0
    %p85 = por %p83, %p84
    %p86 = scmp.ne.s32.totalorder %s78, %s80
    %p87 = scmp.eq.s32.totalorder %s16, 3
    %p88 = por %p86, %p87
    %p89 = scmp.ne.s32.totalorder %s80, %s81
    %p90 = scmp.eq.s32.totalorder %s16, 0
    %p91 = por %p89, %p90
    %p92 = scmp.ne.s32.totalorder %s80, %s81
    %p93 = scmp.eq.s32.totalorder %s17, 3
    %p94 = por %p92, %p93
    %p96 = scmp.ne.s32.totalorder %s81, %s95
    %p97 = scmp.eq.s32.totalorder %s17, 0
    %p98 = por %p96, %p97
    %s100 = sadd.s32 %s99, 1
    %p103 = scmp.eq.s32.totalorder %s11, 3
    %p104 = scmp.ne.s32.totalorder %s99, %s101
    %p105 = scmp.eq.s32.totalorder %s11, 0
    %p106 = por %p104, %p105
    %p107 = scmp.ne.s32.totalorder %s99, %s101
    %p108 = scmp.eq.s32.totalorder %s16, 3
    %p109 = por %p107, %p108
    %p110 = scmp.ne.s32.totalorder %s101, %s102
    %p111 = scmp.eq.s32.totalorder %s16, 0
    %p112 = por %p110, %p111
    %p113 = scmp.ne.s32.totalorder %s101, %s102
    %p114 = scmp.eq.s32.totalorder %s17, 3
    %p115 = por %p113, %p114
    %p117 = scmp.ne.s32.totalorder %s102, %s116
    %p118 = scmp.eq.s32.totalorder %s17, 0
    %p119 = por %p117, %p118
    %s120 = ssub.s32 %s18, %s30
    %s121 = ssub.s32 %s19, %s26
    %s122 = sor.u32 %s120, %s121
    %p123 = scmp.eq.s32.totalorder %s122, 0
    %s125 = sadd.s32 %s124, 1
    %s126 = scalar_select %p123, %s124, %s125
    %p129 = pneg %p123
    %p130 = scmp.eq.s32.totalorder %s11, 3
    %p131 = por %p129, %p130
    %p132 = scmp.ne.s32.totalorder %s124, %s127
    %p133 = scmp.eq.s32.totalorder %s11, 0
    %p134 = por %p132, %p133
    %p135 = scmp.ne.s32.totalorder %s124, %s127
    %p136 = scmp.eq.s32.totalorder %s16, 3
    %p137 = por %p135, %p136
    %p138 = scmp.ne.s32.totalorder %s127, %s128
    %p139 = scmp.eq.s32.totalorder %s16, 0
    %p140 = por %p138, %p139
    %p141 = scmp.ne.s32.totalorder %s127, %s128
    %p142 = scmp.eq.s32.totalorder %s17, 3
    %p143 = por %p141, %p142
    %p145 = scmp.ne.s32.totalorder %s128, %s144
    %p146 = scmp.eq.s32.totalorder %s17, 0
    %p147 = por %p145, %p146
    %p148 = scmp.le.s32.totalorder 1, %s11
    %p149 = scmp.lt.s32.totalorder %s11, 5
    %p150 = pnand %p148, %p149
    %p151 = pneg %p150
    // Predicated region
    $region9: #{tpu_custom_call.1} parent=5 // pred_check
      _
    $region10: #{tpu_custom_call.1} parent=5 // pred_check_branch
      %153 = sbr.rel (%p150) target = $region12
    $region11: #{tpu_custom_call.1} parent=5 // pred_region
      %s154 = ssub.s32 %s11, 1
      // Predicated region
      $region13: #{tpu_custom_call.1} parent=11 // pred_check
        %p155 = pneg %p70
      $region14: #{tpu_custom_call.1} parent=11 // pred_check_branch
        %157 = sbr.rel (%p155) target = $region16
      $region15: #{tpu_custom_call.1} parent=11 // pred_region
        _
      $region16: #{tpu_custom_call.1} parent=11 // pred_fallthru
        _
      // Predicated region
      $region17: #{tpu_custom_call.1} parent=11 // pred_check
        %p158 = pneg %p91
      $region18: #{tpu_custom_call.1} parent=11 // pred_check_branch
        %160 = sbr.rel (%p158) target = $region20
      $region19: #{tpu_custom_call.1} parent=11 // pred_region
        _
      $region20: #{tpu_custom_call.1} parent=11 // pred_fallthru
        _
      // Predicated region
      $region21: #{tpu_custom_call.1} parent=11 // pred_check
        %p161 = pneg %p112
      $region22: #{tpu_custom_call.1} parent=11 // pred_check_branch
        %163 = sbr.rel (%p161) target = $region24
      $region23: #{tpu_custom_call.1} parent=11 // pred_region
        _
      $region24: #{tpu_custom_call.1} parent=11 // pred_fallthru
        _
    $region12: #{tpu_custom_call.1} parent=5 // pred_fallthru
      _
    %p164 = scmp.lt.s32.totalorder %s11, 4
    // Predicated region
    $region25: #{tpu_custom_call.1} parent=5 // pred_check
      %p165 = pneg %p164
    $region26: #{tpu_custom_call.1} parent=5 // pred_check_branch
      %167 = sbr.rel (%p165) target = $region28
    $region27: #{tpu_custom_call.1} parent=5 // pred_region
      // Predicated region
      $region29: #{tpu_custom_call.1} parent=27 // pred_check
        %p168 = pneg %p43
      $region30: #{tpu_custom_call.1} parent=27 // pred_check_branch
        %170 = sbr.rel (%p168) target = $region32
      $region31: #{tpu_custom_call.1} parent=27 // pred_region
        %p171 = scmp.lt.s32.totalorder %s18, 1
        %s172 = scalar_select %p171, %s18, 1
        %s173 = smul.addr %s172, 54
        %s174 = smul.addr %s173, 8
        %s175 = scalar_lea.vmem %s0, %s174
      $region32: #{tpu_custom_call.1} parent=27 // pred_fallthru
        _
    $region28: #{tpu_custom_call.1} parent=5 // pred_fallthru
      _
    %p176 = scmp.le.s32.totalorder 1, %s11
    %p177 = scmp.lt.s32.totalorder %s11, 5
    %p178 = pnand %p176, %p177
    %p179 = pneg %p178
    // Predicated region
    $region33: #{tpu_custom_call.1} parent=5 // pred_check
      _
    $region34: #{tpu_custom_call.1} parent=5 // pred_check_branch
      %181 = sbr.rel (%p178) target = $region36
    $region35: #{tpu_custom_call.1} parent=5 // pred_region
      %s182 = ssub.s32 %s11, 1
      %p183 = scmp.lt.s32.totalorder %s20, 1
      %s184 = scalar_select %p183, %s20, 1
      %s185 = smul.addr %s184, 54
      %s186 = smul.addr %s185, 8
      %s187 = scalar_lea.vmem %s0, %s186
      %p188 = pneg %p49
      %p189 = pneg %p46
      %p190 = pneg %p70
      %p191 = pneg %p67
      %p192 = pneg %p91
      %p193 = pneg %p88
      %p194 = pneg %p112
      %p195 = pneg %p109
      %p196 = pneg %p140
      %p197 = pneg %p137
      %s198 = smul.u32 8, %s21
      %p199 = scmp.lt.s32.totalorder %s20, 1
      %s200 = scalar_select %p199, %s20, 1
      %p201 = scmp.lt.s32.totalorder %s198, 15
      %s202 = scalar_select %p201, %s198, 15
      %s203 = smul.addr %s202, 4
      %s204 = smul.addr %s200, 64
      %s205 = sadd.s32 %s203, %s204
      %s206 = smul.addr %s205, 8
      %s207 = scalar_lea.vmem %s4, %s206
      %p208 = scmp.lt.s32.totalorder %s20, 1
      %s209 = scalar_select %p208, %s20, 1
      %s210 = smul.addr %s209, 54
      %s211 = smul.addr %s210, 8
      %s212 = scalar_lea.vmem %s0, %s211
      %s213 = smul.u32 8, %s21
      %p214 = scmp.lt.s32.totalorder %s20, 1
      %s215 = scalar_select %p214, %s20, 1
      %p216 = scmp.lt.s32.totalorder %s213, 15
      %s217 = scalar_select %p216, %s213, 15
      %s218 = smul.addr %s217, 4
      %s219 = smul.addr %s215, 64
      %s220 = sadd.s32 %s218, %s219
      %s221 = smul.addr %s220, 8
      %s222 = scalar_lea.vmem %s4, %s221
      %s223 = smul.u32 8, %s21
      %s225 = smul.u32 %s21, 8
      %s226 = smul.u32 %s225, 24
      %s227 = scalar_lea.vmem %s212, %s226
      %v228 = vld [vmem:[%s227] sm:$0xff]
      %v229 = vld [vmem:[%s227 + $0x8] sm:$0xff]
      %v230 = vld [vmem:[%s227 + $0x10] sm:$0x3]
      %v231 = vld [vmem:[%s227 + $0x18] sm:$0xff]
      %v232 = vld [vmem:[%s227 + $0x20] sm:$0xff]
      %v233 = vld [vmem:[%s227 + $0x28] sm:$0x3]
      %v234 = vld [vmem:[%s227 + $0x30] sm:$0xff]
      %v235 = vld [vmem:[%s227 + $0x38] sm:$0xff]
      %v236 = vld [vmem:[%s227 + $0x40] sm:$0x3]
      %v237 = vld [vmem:[%s227 + $0x48] sm:$0xff]
      %v238 = vld [vmem:[%s227 + $0x50] sm:$0xff]
      %v239 = vld [vmem:[%s227 + $0x58] sm:$0x3]
      %v240 = vld [vmem:[%s227 + $0x60] sm:$0xff]
      %v241 = vld [vmem:[%s227 + $0x68] sm:$0xff]
      %v242 = vld [vmem:[%s227 + $0x70] sm:$0x3]
      %v243 = vld [vmem:[%s227 + $0x78] sm:$0xff]
      %v244 = vld [vmem:[%s227 + $0x80] sm:$0xff]
      %v245 = vld [vmem:[%s227 + $0x88] sm:$0x3]
      %v246 = vld [vmem:[%s227 + $0x90] sm:$0xff]
      %v247 = vld [vmem:[%s227 + $0x98] sm:$0xff]
      %v248 = vld [vmem:[%s227 + $0xa0] sm:$0x3]
      %v249 = vld [vmem:[%s227 + $0xa8] sm:$0xff]
      %v250 = vld [vmem:[%s227 + $0xb0] sm:$0xff]
      %v251 = vld [vmem:[%s227 + $0xb8] sm:$0x3]
      %s252 = sadd.s32 %s225, 1
      %s253 = smul.u32 %s252, 24
      %s254 = scalar_lea.vmem %s212, %s253
      %v255 = vld [vmem:[%s254] sm:$0xff]
      %v256 = vld [vmem:[%s254 + $0x8] sm:$0xff]
      %v257 = vld [vmem:[%s254 + $0x10] sm:$0x3]
      %v258 = vld [vmem:[%s254 + $0x18] sm:$0xff]
      %v259 = vld [vmem:[%s254 + $0x20] sm:$0xff]
      %v260 = vld [vmem:[%s254 + $0x28] sm:$0x3]
      %v261 = vld [vmem:[%s254 + $0x30] sm:$0xff]
      %v262 = vld [vmem:[%s254 + $0x38] sm:$0xff]
      %v263 = vld [vmem:[%s254 + $0x40] sm:$0x3]
      %v264 = vld [vmem:[%s254 + $0x48] sm:$0xff]
      %v265 = vld [vmem:[%s254 + $0x50] sm:$0xff]
      %v266 = vld [vmem:[%s254 + $0x58] sm:$0x3]
      %v267 = vld [vmem:[%s254 + $0x60] sm:$0xff]
      %v268 = vld [vmem:[%s254 + $0x68] sm:$0xff]
      %v269 = vld [vmem:[%s254 + $0x70] sm:$0x3]
      %v270 = vld [vmem:[%s254 + $0x78] sm:$0xff]
      %v271 = vld [vmem:[%s254 + $0x80] sm:$0xff]
      %v272 = vld [vmem:[%s254 + $0x88] sm:$0x3]
      %v273 = vld [vmem:[%s254 + $0x90] sm:$0xff]
      %v274 = vld [vmem:[%s254 + $0x98] sm:$0xff]
      %v275 = vld [vmem:[%s254 + $0xa0] sm:$0x3]
      %v276 = vld [vmem:[%s254 + $0xa8] sm:$0xff]
      %v277 = vld [vmem:[%s254 + $0xb0] sm:$0xff]
      %v278 = vld [vmem:[%s254 + $0xb8] sm:$0x3]
      %s279 = sadd.s32 %s225, 2
      %s280 = smul.u32 %s279, 24
      %s281 = scalar_lea.vmem %s212, %s280
      %v282 = vld [vmem:[%s281] sm:$0xff]
      %v283 = vld [vmem:[%s281 + $0x8] sm:$0xff]
      %v284 = vld [vmem:[%s281 + $0x10] sm:$0x3]
      %v285 = vld [vmem:[%s281 + $0x18] sm:$0xff]
      %v286 = vld [vmem:[%s281 + $0x20] sm:$0xff]
      %v287 = vld [vmem:[%s281 + $0x28] sm:$0x3]
      %v288 = vld [vmem:[%s281 + $0x30] sm:$0xff]
      %v289 = vld [vmem:[%s281 + $0x38] sm:$0xff]
      %v290 = vld [vmem:[%s281 + $0x40] sm:$0x3]
      %v291 = vld [vmem:[%s281 + $0x48] sm:$0xff]
      %v292 = vld [vmem:[%s281 + $0x50] sm:$0xff]
      %v293 = vld [vmem:[%s281 + $0x58] sm:$0x3]
      %v294 = vld [vmem:[%s281 + $0x60] sm:$0xff]
      %v295 = vld [vmem:[%s281 + $0x68] sm:$0xff]
      %v296 = vld [vmem:[%s281 + $0x70] sm:$0x3]
      %v297 = vld [vmem:[%s281 + $0x78] sm:$0xff]
      %v298 = vld [vmem:[%s281 + $0x80] sm:$0xff]
      %v299 = vld [vmem:[%s281 + $0x88] sm:$0x3]
      %v300 = vld [vmem:[%s281 + $0x90] sm:$0xff]
      %v301 = vld [vmem:[%s281 + $0x98] sm:$0xff]
      %v302 = vld [vmem:[%s281 + $0xa0] sm:$0x3]
      %v303 = vld [vmem:[%s281 + $0xa8] sm:$0xff]
      %v304 = vld [vmem:[%s281 + $0xb0] sm:$0xff]
      %v305 = vld [vmem:[%s281 + $0xb8] sm:$0x3]
      %vm330 = vcmask 1046528
      %v331 = vrot.slane %v228, 1
      %v332 = vrot.slane %v229, 1
      %v333 = vsel %vm330, %v331, %v332
      %v334 = vrot.slane %v230, 1
      %v335 = vsel %vm330, %v332, %v334
      %v336 = vrot.slane %v231, 1
      %v337 = vrot.slane %v232, 1
      %v338 = vsel %vm330, %v336, %v337
      %v339 = vrot.slane %v233, 1
      %v340 = vsel %vm330, %v337, %v339
      %v341 = vrot.slane %v234, 1
      %v342 = vrot.slane %v235, 1
      %v343 = vsel %vm330, %v341, %v342
      %v344 = vrot.slane %v236, 1
      %v345 = vsel %vm330, %v342, %v344
      %v346 = vrot.slane %v237, 1
      %v347 = vrot.slane %v238, 1
      %v348 = vsel %vm330, %v346, %v347
      %v349 = vrot.slane %v239, 1
      %v350 = vsel %vm330, %v347, %v349
      %v351 = vrot.slane %v240, 1
      %v352 = vrot.slane %v241, 1
      %v353 = vsel %vm330, %v351, %v352
      %v354 = vrot.slane %v242, 1
      %v355 = vsel %vm330, %v352, %v354
      %v356 = vrot.slane %v243, 1
      %v357 = vrot.slane %v244, 1
      %v358 = vsel %vm330, %v356, %v357
      %v359 = vrot.slane %v245, 1
      %v360 = vsel %vm330, %v357, %v359
      %v361 = vrot.slane %v246, 1
      %v362 = vrot.slane %v247, 1
      %v363 = vsel %vm330, %v361, %v362
      %v364 = vrot.slane %v248, 1
      %v365 = vsel %vm330, %v362, %v364
      %v366 = vrot.slane %v249, 1
      %v367 = vrot.slane %v250, 1
      %v368 = vsel %vm330, %v366, %v367
      %v369 = vrot.slane %v251, 1
      %v370 = vsel %vm330, %v367, %v369
      %371 = vrot.lane.b32.xlu0 %v333, 4
      %v372 = vpop.permute.xlu0 %371
      %373 = vrot.lane.b32.xlu0 %v335, 4
      %v374 = vpop.permute.xlu0 %373
      %375 = vrot.lane.b32.xlu0 %v338, 4
      %v376 = vpop.permute.xlu0 %375
      %377 = vrot.lane.b32.xlu0 %v340, 4
      %v378 = vpop.permute.xlu0 %377
      %379 = vrot.lane.b32.xlu0 %v343, 4
      %v380 = vpop.permute.xlu0 %379
      %381 = vrot.lane.b32.xlu0 %v345, 4
      %v382 = vpop.permute.xlu0 %381
      %383 = vrot.lane.b32.xlu0 %v348, 4
      %v384 = vpop.permute.xlu0 %383
      %385 = vrot.lane.b32.xlu0 %v350, 4
      %v386 = vpop.permute.xlu0 %385
      %387 = vrot.lane.b32.xlu0 %v353, 4
      %v388 = vpop.permute.xlu0 %387
      %389 = vrot.lane.b32.xlu0 %v355, 4
      %v390 = vpop.permute.xlu0 %389
      %391 = vrot.lane.b32.xlu0 %v358, 4
      %v392 = vpop.permute.xlu0 %391
      %393 = vrot.lane.b32.xlu0 %v360, 4
      %v394 = vpop.permute.xlu0 %393
      %395 = vrot.lane.b32.xlu0 %v363, 4
      %v396 = vpop.permute.xlu0 %395
      %397 = vrot.lane.b32.xlu0 %v365, 4
      %v398 = vpop.permute.xlu0 %397
      %399 = vrot.lane.b32.xlu0 %v368, 4
      %v400 = vpop.permute.xlu0 %399
      %401 = vrot.lane.b32.xlu0 %v370, 4
      %v402 = vpop.permute.xlu0 %401
      %vm419 = vcmask 1045504
      %v420 = vrot.slane %v228, 2
      %v421 = vrot.slane %v229, 2
      %v422 = vsel %vm419, %v420, %v421
      %v423 = vrot.slane %v230, 2
      %v424 = vsel %vm419, %v421, %v423
      %v425 = vrot.slane %v231, 2
      %v426 = vrot.slane %v232, 2
      %v427 = vsel %vm419, %v425, %v426
      %v428 = vrot.slane %v233, 2
      %v429 = vsel %vm419, %v426, %v428
      %v430 = vrot.slane %v234, 2
      %v431 = vrot.slane %v235, 2
      %v432 = vsel %vm419, %v430, %v431
      %v433 = vrot.slane %v236, 2
      %v434 = vsel %vm419, %v431, %v433
      %v435 = vrot.slane %v237, 2
      %v436 = vrot.slane %v238, 2
      %v437 = vsel %vm419, %v435, %v436
      %v438 = vrot.slane %v239, 2
      %v439 = vsel %vm419, %v436, %v438
      %v440 = vrot.slane %v240, 2
      %v441 = vrot.slane %v241, 2
      %v442 = vsel %vm419, %v440, %v441
      %v443 = vrot.slane %v242, 2
      %v444 = vsel %vm419, %v441, %v443
      %v445 = vrot.slane %v243, 2
      %v446 = vrot.slane %v244, 2
      %v447 = vsel %vm419, %v445, %v446
      %v448 = vrot.slane %v245, 2
      %v449 = vsel %vm419, %v446, %v448
      %v450 = vrot.slane %v246, 2
      %v451 = vrot.slane %v247, 2
      %v452 = vsel %vm419, %v450, %v451
      %v453 = vrot.slane %v248, 2
      %v454 = vsel %vm419, %v451, %v453
      %v455 = vrot.slane %v249, 2
      %v456 = vrot.slane %v250, 2
      %v457 = vsel %vm419, %v455, %v456
      %v458 = vrot.slane %v251, 2
      %v459 = vsel %vm419, %v456, %v458
      %460 = vrot.lane.b32.xlu0 %v422, 8
      %v461 = vpop.permute.xlu0 %460
      %462 = vrot.lane.b32.xlu0 %v424, 8
      %v463 = vpop.permute.xlu0 %462
      %464 = vrot.lane.b32.xlu0 %v427, 8
      %v465 = vpop.permute.xlu0 %464
      %466 = vrot.lane.b32.xlu0 %v429, 8
      %v467 = vpop.permute.xlu0 %466
      %468 = vrot.lane.b32.xlu0 %v432, 8
      %v469 = vpop.permute.xlu0 %468
      %470 = vrot.lane.b32.xlu0 %v434, 8
      %v471 = vpop.permute.xlu0 %470
      %472 = vrot.lane.b32.xlu0 %v437, 8
      %v473 = vpop.permute.xlu0 %472
      %474 = vrot.lane.b32.xlu0 %v439, 8
      %v475 = vpop.permute.xlu0 %474
      %476 = vrot.lane.b32.xlu0 %v442, 8
      %v477 = vpop.permute.xlu0 %476
      %478 = vrot.lane.b32.xlu0 %v444, 8
      %v479 = vpop.permute.xlu0 %478
      %480 = vrot.lane.b32.xlu0 %v447, 8
      %v481 = vpop.permute.xlu0 %480
      %482 = vrot.lane.b32.xlu0 %v449, 8
      %v483 = vpop.permute.xlu0 %482
      %484 = vrot.lane.b32.xlu0 %v452, 8
      %v485 = vpop.permute.xlu0 %484
      %486 = vrot.lane.b32.xlu0 %v454, 8
      %v487 = vpop.permute.xlu0 %486
      %488 = vrot.lane.b32.xlu0 %v457, 8
      %v489 = vpop.permute.xlu0 %488
      %490 = vrot.lane.b32.xlu0 %v459, 8
      %v491 = vpop.permute.xlu0 %490
      %524 = vrot.lane.b32.xlu0 %v255, 12
      %v525 = vpop.permute.xlu0 %524
      %526 = vrot.lane.b32.xlu0 %v256, 12
      %v527 = vpop.permute.xlu0 %526
      %528 = vrot.lane.b32.xlu0 %v258, 12
      %v529 = vpop.permute.xlu0 %528
      %530 = vrot.lane.b32.xlu0 %v259, 12
      %v531 = vpop.permute.xlu0 %530
      %532 = vrot.lane.b32.xlu0 %v261, 12
      %v533 = vpop.permute.xlu0 %532
      %534 = vrot.lane.b32.xlu0 %v262, 12
      %v535 = vpop.permute.xlu0 %534
      %536 = vrot.lane.b32.xlu0 %v264, 12
      %v537 = vpop.permute.xlu0 %536
      %538 = vrot.lane.b32.xlu0 %v265, 12
      %v539 = vpop.permute.xlu0 %538
      %540 = vrot.lane.b32.xlu0 %v267, 12
      %v541 = vpop.permute.xlu0 %540
      %542 = vrot.lane.b32.xlu0 %v268, 12
      %v543 = vpop.permute.xlu0 %542
      %544 = vrot.lane.b32.xlu0 %v270, 12
      %v545 = vpop.permute.xlu0 %544
      %546 = vrot.lane.b32.xlu0 %v271, 12
      %v547 = vpop.permute.xlu0 %546
      %548 = vrot.lane.b32.xlu0 %v273, 12
      %v549 = vpop.permute.xlu0 %548
      %550 = vrot.lane.b32.xlu0 %v274, 12
      %v551 = vpop.permute.xlu0 %550
      %552 = vrot.lane.b32.xlu0 %v276, 12
      %v553 = vpop.permute.xlu0 %552
      %554 = vrot.lane.b32.xlu0 %v277, 12
      %v555 = vpop.permute.xlu0 %554
      %v580 = vrot.slane %v255, 1
      %v581 = vrot.slane %v256, 1
      %v582 = vsel %vm330, %v580, %v581
      %v583 = vrot.slane %v257, 1
      %v584 = vsel %vm330, %v581, %v583
      %v585 = vrot.slane %v258, 1
      %v586 = vrot.slane %v259, 1
      %v587 = vsel %vm330, %v585, %v586
      %v588 = vrot.slane %v260, 1
      %v589 = vsel %vm330, %v586, %v588
      %v590 = vrot.slane %v261, 1
      %v591 = vrot.slane %v262, 1
      %v592 = vsel %vm330, %v590, %v591
      %v593 = vrot.slane %v263, 1
      %v594 = vsel %vm330, %v591, %v593
      %v595 = vrot.slane %v264, 1
      %v596 = vrot.slane %v265, 1
      %v597 = vsel %vm330, %v595, %v596
      %v598 = vrot.slane %v266, 1
      %v599 = vsel %vm330, %v596, %v598
      %v600 = vrot.slane %v267, 1
      %v601 = vrot.slane %v268, 1
      %v602 = vsel %vm330, %v600, %v601
      %v603 = vrot.slane %v269, 1
      %v604 = vsel %vm330, %v601, %v603
      %v605 = vrot.slane %v270, 1
      %v606 = vrot.slane %v271, 1
      %v607 = vsel %vm330, %v605, %v606
      %v608 = vrot.slane %v272, 1
      %v609 = vsel %vm330, %v606, %v608
      %v610 = vrot.slane %v273, 1
      %v611 = vrot.slane %v274, 1
      %v612 = vsel %vm330, %v610, %v611
      %v613 = vrot.slane %v275, 1
      %v614 = vsel %vm330, %v611, %v613
      %v615 = vrot.slane %v276, 1
      %v616 = vrot.slane %v277, 1
      %v617 = vsel %vm330, %v615, %v616
      %v618 = vrot.slane %v278, 1
      %v619 = vsel %vm330, %v616, %v618
      %620 = vrot.lane.b32.xlu0 %v582, 16
      %v621 = vpop.permute.xlu0 %620
      %622 = vrot.lane.b32.xlu0 %v584, 16
      %v623 = vpop.permute.xlu0 %622
      %624 = vrot.lane.b32.xlu0 %v587, 16
      %v625 = vpop.permute.xlu0 %624
      %626 = vrot.lane.b32.xlu0 %v589, 16
      %v627 = vpop.permute.xlu0 %626
      %628 = vrot.lane.b32.xlu0 %v592, 16
      %v629 = vpop.permute.xlu0 %628
      %630 = vrot.lane.b32.xlu0 %v594, 16
      %v631 = vpop.permute.xlu0 %630
      %632 = vrot.lane.b32.xlu0 %v597, 16
      %v633 = vpop.permute.xlu0 %632
      %634 = vrot.lane.b32.xlu0 %v599, 16
      %v635 = vpop.permute.xlu0 %634
      %636 = vrot.lane.b32.xlu0 %v602, 16
      %v637 = vpop.permute.xlu0 %636
      %638 = vrot.lane.b32.xlu0 %v604, 16
      %v639 = vpop.permute.xlu0 %638
      %640 = vrot.lane.b32.xlu0 %v607, 16
      %v641 = vpop.permute.xlu0 %640
      %642 = vrot.lane.b32.xlu0 %v609, 16
      %v643 = vpop.permute.xlu0 %642
      %644 = vrot.lane.b32.xlu0 %v612, 16
      %v645 = vpop.permute.xlu0 %644
      %646 = vrot.lane.b32.xlu0 %v614, 16
      %v647 = vpop.permute.xlu0 %646
      %648 = vrot.lane.b32.xlu0 %v617, 16
      %v649 = vpop.permute.xlu0 %648
      %650 = vrot.lane.b32.xlu0 %v619, 16
      %v651 = vpop.permute.xlu0 %650
      %v668 = vrot.slane %v255, 2
      %v669 = vrot.slane %v256, 2
      %v670 = vsel %vm419, %v668, %v669
      %v671 = vrot.slane %v257, 2
      %v672 = vsel %vm419, %v669, %v671
      %v673 = vrot.slane %v258, 2
      %v674 = vrot.slane %v259, 2
      %v675 = vsel %vm419, %v673, %v674
      %v676 = vrot.slane %v260, 2
      %v677 = vsel %vm419, %v674, %v676
      %v678 = vrot.slane %v261, 2
      %v679 = vrot.slane %v262, 2
      %v680 = vsel %vm419, %v678, %v679
      %v681 = vrot.slane %v263, 2
      %v682 = vsel %vm419, %v679, %v681
      %v683 = vrot.slane %v264, 2
      %v684 = vrot.slane %v265, 2
      %v685 = vsel %vm419, %v683, %v684
      %v686 = vrot.slane %v266, 2
      %v687 = vsel %vm419, %v684, %v686
      %v688 = vrot.slane %v267, 2
      %v689 = vrot.slane %v268, 2
      %v690 = vsel %vm419, %v688, %v689
      %v691 = vrot.slane %v269, 2
      %v692 = vsel %vm419, %v689, %v691
      %v693 = vrot.slane %v270, 2
      %v694 = vrot.slane %v271, 2
      %v695 = vsel %vm419, %v693, %v694
      %v696 = vrot.slane %v272, 2
      %v697 = vsel %vm419, %v694, %v696
      %v698 = vrot.slane %v273, 2
      %v699 = vrot.slane %v274, 2
      %v700 = vsel %vm419, %v698, %v699
      %v701 = vrot.slane %v275, 2
      %v702 = vsel %vm419, %v699, %v701
      %v703 = vrot.slane %v276, 2
      %v704 = vrot.slane %v277, 2
      %v705 = vsel %vm419, %v703, %v704
      %v706 = vrot.slane %v278, 2
      %v707 = vsel %vm419, %v704, %v706
      %708 = vrot.lane.b32.xlu0 %v670, 20
      %v709 = vpop.permute.xlu0 %708
      %710 = vrot.lane.b32.xlu0 %v672, 20
      %v711 = vpop.permute.xlu0 %710
      %712 = vrot.lane.b32.xlu0 %v675, 20
      %v713 = vpop.permute.xlu0 %712
      %714 = vrot.lane.b32.xlu0 %v677, 20
      %v715 = vpop.permute.xlu0 %714
      %716 = vrot.lane.b32.xlu0 %v680, 20
      %v717 = vpop.permute.xlu0 %716
      %718 = vrot.lane.b32.xlu0 %v682, 20
      %v719 = vpop.permute.xlu0 %718
      %720 = vrot.lane.b32.xlu0 %v685, 20
      %v721 = vpop.permute.xlu0 %720
      %722 = vrot.lane.b32.xlu0 %v687, 20
      %v723 = vpop.permute.xlu0 %722
      %724 = vrot.lane.b32.xlu0 %v690, 20
      %v725 = vpop.permute.xlu0 %724
      %726 = vrot.lane.b32.xlu0 %v692, 20
      %v727 = vpop.permute.xlu0 %726
      %728 = vrot.lane.b32.xlu0 %v695, 20
      %v729 = vpop.permute.xlu0 %728
      %730 = vrot.lane.b32.xlu0 %v697, 20
      %v731 = vpop.permute.xlu0 %730
      %732 = vrot.lane.b32.xlu0 %v700, 20
      %v733 = vpop.permute.xlu0 %732
      %734 = vrot.lane.b32.xlu0 %v702, 20
      %v735 = vpop.permute.xlu0 %734
      %736 = vrot.lane.b32.xlu0 %v705, 20
      %v737 = vpop.permute.xlu0 %736
      %738 = vrot.lane.b32.xlu0 %v707, 20
      %v739 = vpop.permute.xlu0 %738
      %772 = vrot.lane.b32.xlu0 %v282, 24
      %v773 = vpop.permute.xlu0 %772
      %774 = vrot.lane.b32.xlu0 %v283, 24
      %v775 = vpop.permute.xlu0 %774
      %776 = vrot.lane.b32.xlu0 %v285, 24
      %v777 = vpop.permute.xlu0 %776
      %778 = vrot.lane.b32.xlu0 %v286, 24
      %v779 = vpop.permute.xlu0 %778
      %780 = vrot.lane.b32.xlu0 %v288, 24
      %v781 = vpop.permute.xlu0 %780
      %782 = vrot.lane.b32.xlu0 %v289, 24
      %v783 = vpop.permute.xlu0 %782
      %784 = vrot.lane.b32.xlu0 %v291, 24
      %v785 = vpop.permute.xlu0 %784
      %786 = vrot.lane.b32.xlu0 %v292, 24
      %v787 = vpop.permute.xlu0 %786
      %788 = vrot.lane.b32.xlu0 %v294, 24
      %v789 = vpop.permute.xlu0 %788
      %790 = vrot.lane.b32.xlu0 %v295, 24
      %v791 = vpop.permute.xlu0 %790
      %792 = vrot.lane.b32.xlu0 %v297, 24
      %v793 = vpop.permute.xlu0 %792
      %794 = vrot.lane.b32.xlu0 %v298, 24
      %v795 = vpop.permute.xlu0 %794
      %796 = vrot.lane.b32.xlu0 %v300, 24
      %v797 = vpop.permute.xlu0 %796
      %798 = vrot.lane.b32.xlu0 %v301, 24
      %v799 = vpop.permute.xlu0 %798
      %800 = vrot.lane.b32.xlu0 %v303, 24
      %v801 = vpop.permute.xlu0 %800
      %802 = vrot.lane.b32.xlu0 %v304, 24
      %v803 = vpop.permute.xlu0 %802
      %v828 = vrot.slane %v282, 1
      %v829 = vrot.slane %v283, 1
      %v830 = vsel %vm330, %v828, %v829
      %v831 = vrot.slane %v284, 1
      %v832 = vsel %vm330, %v829, %v831
      %v833 = vrot.slane %v285, 1
      %v834 = vrot.slane %v286, 1
      %v835 = vsel %vm330, %v833, %v834
      %v836 = vrot.slane %v287, 1
      %v837 = vsel %vm330, %v834, %v836
      %v838 = vrot.slane %v288, 1
      %v839 = vrot.slane %v289, 1
      %v840 = vsel %vm330, %v838, %v839
      %v841 = vrot.slane %v290, 1
      %v842 = vsel %vm330, %v839, %v841
      %v843 = vrot.slane %v291, 1
      %v844 = vrot.slane %v292, 1
      %v845 = vsel %vm330, %v843, %v844
      %v846 = vrot.slane %v293, 1
      %v847 = vsel %vm330, %v844, %v846
      %v848 = vrot.slane %v294, 1
      %v849 = vrot.slane %v295, 1
      %v850 = vsel %vm330, %v848, %v849
      %v851 = vrot.slane %v296, 1
      %v852 = vsel %vm330, %v849, %v851
      %v853 = vrot.slane %v297, 1
      %v854 = vrot.slane %v298, 1
      %v855 = vsel %vm330, %v853, %v854
      %v856 = vrot.slane %v299, 1
      %v857 = vsel %vm330, %v854, %v856
      %v858 = vrot.slane %v300, 1
      %v859 = vrot.slane %v301, 1
      %v860 = vsel %vm330, %v858, %v859
      %v861 = vrot.slane %v302, 1
      %v862 = vsel %vm330, %v859, %v861
      %v863 = vrot.slane %v303, 1
      %v864 = vrot.slane %v304, 1
      %v865 = vsel %vm330, %v863, %v864
      %v866 = vrot.slane %v305, 1
      %v867 = vsel %vm330, %v864, %v866
      %868 = vrot.lane.b32.xlu0 %v830, 28
      %v869 = vpop.permute.xlu0 %868
      %870 = vrot.lane.b32.xlu0 %v832, 28
      %v871 = vpop.permute.xlu0 %870
      %872 = vrot.lane.b32.xlu0 %v835, 28
      %v873 = vpop.permute.xlu0 %872
      %874 = vrot.lane.b32.xlu0 %v837, 28
      %v875 = vpop.permute.xlu0 %874
      %876 = vrot.lane.b32.xlu0 %v840, 28
      %v877 = vpop.permute.xlu0 %876
      %878 = vrot.lane.b32.xlu0 %v842, 28
      %v879 = vpop.permute.xlu0 %878
      %880 = vrot.lane.b32.xlu0 %v845, 28
      %v881 = vpop.permute.xlu0 %880
      %882 = vrot.lane.b32.xlu0 %v847, 28
      %v883 = vpop.permute.xlu0 %882
      %884 = vrot.lane.b32.xlu0 %v850, 28
      %v885 = vpop.permute.xlu0 %884
      %886 = vrot.lane.b32.xlu0 %v852, 28
      %v887 = vpop.permute.xlu0 %886
      %888 = vrot.lane.b32.xlu0 %v855, 28
      %v889 = vpop.permute.xlu0 %888
      %890 = vrot.lane.b32.xlu0 %v857, 28
      %v891 = vpop.permute.xlu0 %890
      %892 = vrot.lane.b32.xlu0 %v860, 28
      %v893 = vpop.permute.xlu0 %892
      %894 = vrot.lane.b32.xlu0 %v862, 28
      %v895 = vpop.permute.xlu0 %894
      %896 = vrot.lane.b32.xlu0 %v865, 28
      %v897 = vpop.permute.xlu0 %896
      %898 = vrot.lane.b32.xlu0 %v867, 28
      %v899 = vpop.permute.xlu0 %898
      %v916 = vrot.slane %v282, 2
      %v917 = vrot.slane %v283, 2
      %v918 = vsel %vm419, %v916, %v917
      %v919 = vrot.slane %v284, 2
      %v920 = vsel %vm419, %v917, %v919
      %v921 = vrot.slane %v285, 2
      %v922 = vrot.slane %v286, 2
      %v923 = vsel %vm419, %v921, %v922
      %v924 = vrot.slane %v287, 2
      %v925 = vsel %vm419, %v922, %v924
      %v926 = vrot.slane %v288, 2
      %v927 = vrot.slane %v289, 2
      %v928 = vsel %vm419, %v926, %v927
      %v929 = vrot.slane %v290, 2
      %v930 = vsel %vm419, %v927, %v929
      %v931 = vrot.slane %v291, 2
      %v932 = vrot.slane %v292, 2
      %v933 = vsel %vm419, %v931, %v932
      %v934 = vrot.slane %v293, 2
      %v935 = vsel %vm419, %v932, %v934
      %v936 = vrot.slane %v294, 2
      %v937 = vrot.slane %v295, 2
      %v938 = vsel %vm419, %v936, %v937
      %v939 = vrot.slane %v296, 2
      %v940 = vsel %vm419, %v937, %v939
      %v941 = vrot.slane %v297, 2
      %v942 = vrot.slane %v298, 2
      %v943 = vsel %vm419, %v941, %v942
      %v944 = vrot.slane %v299, 2
      %v945 = vsel %vm419, %v942, %v944
      %v946 = vrot.slane %v300, 2
      %v947 = vrot.slane %v301, 2
      %v948 = vsel %vm419, %v946, %v947
      %v949 = vrot.slane %v302, 2
      %v950 = vsel %vm419, %v947, %v949
      %v951 = vrot.slane %v303, 2
      %v952 = vrot.slane %v304, 2
      %v953 = vsel %vm419, %v951, %v952
      %v954 = vrot.slane %v305, 2
      %v955 = vsel %vm419, %v952, %v954
      %956 = vrot.lane.b32.xlu0 %v918, 32
      %v957 = vpop.permute.xlu0 %956
      %958 = vrot.lane.b32.xlu0 %v920, 32
      %v959 = vpop.permute.xlu0 %958
      %960 = vrot.lane.b32.xlu0 %v923, 32
      %v961 = vpop.permute.xlu0 %960
      %962 = vrot.lane.b32.xlu0 %v925, 32
      %v963 = vpop.permute.xlu0 %962
      %964 = vrot.lane.b32.xlu0 %v928, 32
      %v965 = vpop.permute.xlu0 %964
      %966 = vrot.lane.b32.xlu0 %v930, 32
      %v967 = vpop.permute.xlu0 %966
      %968 = vrot.lane.b32.xlu0 %v933, 32
      %v969 = vpop.permute.xlu0 %968
      %970 = vrot.lane.b32.xlu0 %v935, 32
      %v971 = vpop.permute.xlu0 %970
      %972 = vrot.lane.b32.xlu0 %v938, 32
      %v973 = vpop.permute.xlu0 %972
      %974 = vrot.lane.b32.xlu0 %v940, 32
      %v975 = vpop.permute.xlu0 %974
      %976 = vrot.lane.b32.xlu0 %v943, 32
      %v977 = vpop.permute.xlu0 %976
      %978 = vrot.lane.b32.xlu0 %v945, 32
      %v979 = vpop.permute.xlu0 %978
      %980 = vrot.lane.b32.xlu0 %v948, 32
      %v981 = vpop.permute.xlu0 %980
      %982 = vrot.lane.b32.xlu0 %v950, 32
      %v983 = vpop.permute.xlu0 %982
      %984 = vrot.lane.b32.xlu0 %v953, 32
      %v985 = vpop.permute.xlu0 %984
      %986 = vrot.lane.b32.xlu0 %v955, 32
      %v987 = vpop.permute.xlu0 %986
      %vm1004 = vcmask 31744
      %v1005 = vsel %vm1004, %v228, %v372
      %v1006 = vsel %vm1004, %v229, %v374
      %v1007 = vsel %vm1004, %v231, %v376
      %v1008 = vsel %vm1004, %v232, %v378
      %v1009 = vsel %vm1004, %v234, %v380
      %v1010 = vsel %vm1004, %v235, %v382
      %v1011 = vsel %vm1004, %v237, %v384
      %v1012 = vsel %vm1004, %v238, %v386
      %v1013 = vsel %vm1004, %v240, %v388
      %v1014 = vsel %vm1004, %v241, %v390
      %v1015 = vsel %vm1004, %v243, %v392
      %v1016 = vsel %vm1004, %v244, %v394
      %v1017 = vsel %vm1004, %v246, %v396
      %v1018 = vsel %vm1004, %v247, %v398
      %v1019 = vsel %vm1004, %v249, %v400
      %v1020 = vsel %vm1004, %v250, %v402
      %vm1021 = vcmask 64512
      %v1022 = vsel %vm1021, %v1005, %v461
      %v1023 = vsel %vm1021, %v1006, %v463
      %v1024 = vsel %vm1021, %v1007, %v465
      %v1025 = vsel %vm1021, %v1008, %v467
      %v1026 = vsel %vm1021, %v1009, %v469
      %v1027 = vsel %vm1021, %v1010, %v471
      %v1028 = vsel %vm1021, %v1011, %v473
      %v1029 = vsel %vm1021, %v1012, %v475
      %v1030 = vsel %vm1021, %v1013, %v477
      %v1031 = vsel %vm1021, %v1014, %v479
      %v1032 = vsel %vm1021, %v1015, %v481
      %v1033 = vsel %vm1021, %v1016, %v483
      %v1034 = vsel %vm1021, %v1017, %v485
      %v1035 = vsel %vm1021, %v1018, %v487
      %v1036 = vsel %vm1021, %v1019, %v489
      %v1037 = vsel %vm1021, %v1020, %v491
      %vm1038 = vcmask 97280
      %v1039 = vsel %vm1038, %v1022, %v525
      %v1040 = vsel %vm1038, %v1023, %v527
      %v1041 = vsel %vm1038, %v1024, %v529
      %v1042 = vsel %vm1038, %v1025, %v531
      %v1043 = vsel %vm1038, %v1026, %v533
      %v1044 = vsel %vm1038, %v1027, %v535
      %v1045 = vsel %vm1038, %v1028, %v537
      %v1046 = vsel %vm1038, %v1029, %v539
      %v1047 = vsel %vm1038, %v1030, %v541
      %v1048 = vsel %vm1038, %v1031, %v543
      %v1049 = vsel %vm1038, %v1032, %v545
      %v1050 = vsel %vm1038, %v1033, %v547
      %v1051 = vsel %vm1038, %v1034, %v549
      %v1052 = vsel %vm1038, %v1035, %v551
      %v1053 = vsel %vm1038, %v1036, %v553
      %v1054 = vsel %vm1038, %v1037, %v555
      %vm1055 = vcmask 130048
      %v1056 = vsel %vm1055, %v1039, %v621
      %v1057 = vsel %vm1055, %v1040, %v623
      %v1058 = vsel %vm1055, %v1041, %v625
      %v1059 = vsel %vm1055, %v1042, %v627
      %v1060 = vsel %vm1055, %v1043, %v629
      %v1061 = vsel %vm1055, %v1044, %v631
      %v1062 = vsel %vm1055, %v1045, %v633
      %v1063 = vsel %vm1055, %v1046, %v635
      %v1064 = vsel %vm1055, %v1047, %v637
      %v1065 = vsel %vm1055, %v1048, %v639
      %v1066 = vsel %vm1055, %v1049, %v641
      %v1067 = vsel %vm1055, %v1050, %v643
      %v1068 = vsel %vm1055, %v1051, %v645
      %v1069 = vsel %vm1055, %v1052, %v647
      %v1070 = vsel %vm1055, %v1053, %v649
      %v1071 = vsel %vm1055, %v1054, %v651
      %vm1072 = vcmask 162816
      %v1073 = vsel %vm1072, %v1056, %v709
      %v1074 = vsel %vm1072, %v1057, %v711
      %v1075 = vsel %vm1072, %v1058, %v713
      %v1076 = vsel %vm1072, %v1059, %v715
      %v1077 = vsel %vm1072, %v1060, %v717
      %v1078 = vsel %vm1072, %v1061, %v719
      %v1079 = vsel %vm1072, %v1062, %v721
      %v1080 = vsel %vm1072, %v1063, %v723
      %v1081 = vsel %vm1072, %v1064, %v725
      %v1082 = vsel %vm1072, %v1065, %v727
      %v1083 = vsel %vm1072, %v1066, %v729
      %v1084 = vsel %vm1072, %v1067, %v731
      %v1085 = vsel %vm1072, %v1068, %v733
      %v1086 = vsel %vm1072, %v1069, %v735
      %v1087 = vsel %vm1072, %v1070, %v737
      %v1088 = vsel %vm1072, %v1071, %v739
      %vm1089 = vcmask 195584
      %v1090 = vsel %vm1089, %v1073, %v773
      %v1091 = vsel %vm1089, %v1074, %v775
      %v1092 = vsel %vm1089, %v1075, %v777
      %v1093 = vsel %vm1089, %v1076, %v779
      %v1094 = vsel %vm1089, %v1077, %v781
      %v1095 = vsel %vm1089, %v1078, %v783
      %v1096 = vsel %vm1089, %v1079, %v785
      %v1097 = vsel %vm1089, %v1080, %v787
      %v1098 = vsel %vm1089, %v1081, %v789
      %v1099 = vsel %vm1089, %v1082, %v791
      %v1100 = vsel %vm1089, %v1083, %v793
      %v1101 = vsel %vm1089, %v1084, %v795
      %v1102 = vsel %vm1089, %v1085, %v797
      %v1103 = vsel %vm1089, %v1086, %v799
      %v1104 = vsel %vm1089, %v1087, %v801
      %v1105 = vsel %vm1089, %v1088, %v803
      %vm1106 = vcmask 228352
      %v1107 = vsel %vm1106, %v1090, %v869
      %v1108 = vsel %vm1106, %v1091, %v871
      %v1109 = vsel %vm1106, %v1092, %v873
      %v1110 = vsel %vm1106, %v1093, %v875
      %v1111 = vsel %vm1106, %v1094, %v877
      %v1112 = vsel %vm1106, %v1095, %v879
      %v1113 = vsel %vm1106, %v1096, %v881
      %v1114 = vsel %vm1106, %v1097, %v883
      %v1115 = vsel %vm1106, %v1098, %v885
      %v1116 = vsel %vm1106, %v1099, %v887
      %v1117 = vsel %vm1106, %v1100, %v889
      %v1118 = vsel %vm1106, %v1101, %v891
      %v1119 = vsel %vm1106, %v1102, %v893
      %v1120 = vsel %vm1106, %v1103, %v895
      %v1121 = vsel %vm1106, %v1104, %v897
      %v1122 = vsel %vm1106, %v1105, %v899
      %vm1123 = vcmask 261120
      %v1124 = vsel %vm1123, %v1107, %v957
      %v1125 = vsel %vm1123, %v1108, %v959
      %v1126 = vsel %vm1123, %v1109, %v961
      %v1127 = vsel %vm1123, %v1110, %v963
      %v1128 = vsel %vm1123, %v1111, %v965
      %v1129 = vsel %vm1123, %v1112, %v967
      %v1130 = vsel %vm1123, %v1113, %v969
      %v1131 = vsel %vm1123, %v1114, %v971
      %v1132 = vsel %vm1123, %v1115, %v973
      %v1133 = vsel %vm1123, %v1116, %v975
      %v1134 = vsel %vm1123, %v1117, %v977
      %v1135 = vsel %vm1123, %v1118, %v979
      %v1136 = vsel %vm1123, %v1119, %v981
      %v1137 = vsel %vm1123, %v1120, %v983
      %v1138 = vsel %vm1123, %v1121, %v985
      %v1139 = vsel %vm1123, %v1122, %v987
      %v1140 = vpack.c.bf16 %v1125, %v1124
      %v1141 = vpack.c.bf16 %v1127, %v1126
      %v1142 = vpack.c.bf16 %v1129, %v1128
      %v1143 = vpack.c.bf16 %v1131, %v1130
      %v1144 = vpack.c.bf16 %v1133, %v1132
      %v1145 = vpack.c.bf16 %v1135, %v1134
      %v1146 = vpack.c.bf16 %v1137, %v1136
      %v1147 = vpack.c.bf16 %v1139, %v1138
      %v1148 = vld [vmem:[%s1] sm:$0xf]
      %v1149 = vld [vmem:[%s1 + $0x4] sm:$0xf]
      %v1150 = vld [vmem:[%s1 + $0x8] sm:$0xf]
      %v1151 = vld [vmem:[%s1 + $0xc] sm:$0xf]
      %v1152 = vld [vmem:[%s1 + $0x10] sm:$0x3]
      %v1153 = vld [vmem:[%s2] sm:$0x1]
      %v1155 = vlaneseq
      %v1156 = vshrl.u32 %v1155, 7
      %v1157 = vsub.s32 0, %v1156
      %v1158 = vrot.slane %v1153, %v1157
      %v1165 = vunpack.c.l.b16 %v1148
      %v1166 = vunpack.c.l.b16 %v1149
      %v1167 = vunpack.c.l.b16 %v1150
      %v1168 = vunpack.c.l.b16 %v1151
      %v1169 = vunpack.c.l.b16 %v1152
      %v1170 = vpack.c.b16 %v1166, %v1165
      %v1171 = vpack.c.b16 %v1168, %v1167
      %v1172 = vpack.c.b16 %v1169, %v1169
      %vm1175 = vcmask 293888
      %v1177 = vsel %vm1175, %v1140, 0
      %v1180 = vsel %vm1175, %v1141, 0
      %v1183 = vsel %vm1175, %v1142, 0
      %v1186 = vsel %vm1175, %v1143, 0
      %v1189 = vsel %vm1175, %v1144, 0
      %v1192 = vsel %vm1175, %v1145, 0
      %v1195 = vsel %vm1175, %v1146, 0
      %v1198 = vsel %vm1175, %v1147, 0
      %vm1200 = vcmask 1041408
      %v1202 = vsel %vm1200, %v1172, 0
      %1204 = vmatprep.subr.bf16.mxu0 0
      %1205 = vmatpush1.bf16.msra.mxu0 0
      %1206 = vmatprep.subr.bf16.mxu0 0
      %1207 = vmatpush1.bf16.msra.mxu0 0
      %1208 = vmatprep.subr.bf16.mxu0 0
      %1209 = vmatpush1.bf16.msra.mxu0 0
      %1210 = vmatprep.subr.bf16.mxu0 0
      %1211 = vmatpush1.bf16.msra.mxu0 0
      %1212 = vmatprep.subr.bf16.mxu0 0
      %1213 = vmatpush1.bf16.msra.mxu0 0
      %1214 = vmatprep.subr.bf16.mxu0 0
      %1215 = vmatpush1.bf16.msra.mxu0 %v1202
      %1216 = vmatprep.subr.bf16.mxu0 0
      %1217 = vmatpush1.bf16.msra.mxu0 %v1171
      %1218 = vmatprep.subr.bf16.mxu0 0
      %1219 = vmatpush1.bf16.msra.mxu0 %v1170
      %1220 = vmatprep.subr.bf16.mxu0 0
      %1221 = vmatpush2.bf16.msra.mxu0 0
      %1222 = vmatprep.subr.bf16.mxu0 0
      %1223 = vmatpush2.bf16.msra.mxu0 0
      %1224 = vmatprep.subr.bf16.mxu0 0
      %1225 = vmatpush2.bf16.msra.mxu0 0
      %1226 = vmatprep.subr.bf16.mxu0 0
      %1227 = vmatpush2.bf16.msra.mxu0 0
      %1228 = vmatprep.subr.bf16.mxu0 0
      %1229 = vmatpush2.bf16.msra.mxu0 0
      %1230 = vmatprep.subr.bf16.mxu0 0
      %1231 = vmatpush2.bf16.msra.mxu0 0
      %1232 = vmatprep.subr.bf16.mxu0 0
      %1233 = vmatpush2.bf16.msra.mxu0 0
      %1234 = vmatprep.subr.bf16.mxu0 0
      %1235 = vmatpush2.bf16.msra.mxu0 0
      %1236 = vmatprep.mubr.bf16.mxu0 0
      %1237 = vmatmul.mubr.bf16.gmra.mxu0 %v1177
      %v1238 = vpop.f32.mrf.mxu0
      %v1239 = vadd.f32 %v1158, %v1238
      %v1240 = vpop.f32.mrf.mxu0
      %v1241 = vpop.f32.mrf.mxu0
      %v1242 = vadd.f32 %v1158, %v1241
      %v1243 = vpop.f32.mrf.mxu0
      %1244 = vmatprep.mubr.bf16.mxu0 0
      %1245 = vmatmul.mubr.bf16.gmra.mxu0 %v1180
      %v1246 = vpop.f32.mrf.mxu0
      %v1247 = vadd.f32 %v1158, %v1246
      %v1248 = vpop.f32.mrf.mxu0
      %v1249 = vpop.f32.mrf.mxu0
      %v1250 = vadd.f32 %v1158, %v1249
      %v1251 = vpop.f32.mrf.mxu0
      %1252 = vmatprep.mubr.bf16.mxu0 0
      %1253 = vmatmul.mubr.bf16.gmra.mxu0 %v1183
      %v1254 = vpop.f32.mrf.mxu0
      %v1255 = vadd.f32 %v1158, %v1254
      %v1256 = vpop.f32.mrf.mxu0
      %v1257 = vpop.f32.mrf.mxu0
      %v1258 = vadd.f32 %v1158, %v1257
      %v1259 = vpop.f32.mrf.mxu0
      %1260 = vmatprep.mubr.bf16.mxu0 0
      %1261 = vmatmul.mubr.bf16.gmra.mxu0 %v1186
      %v1262 = vpop.f32.mrf.mxu0
      %v1263 = vadd.f32 %v1158, %v1262
      %v1264 = vpop.f32.mrf.mxu0
      %v1265 = vpop.f32.mrf.mxu0
      %v1266 = vadd.f32 %v1158, %v1265
      %v1267 = vpop.f32.mrf.mxu0
      %1268 = vmatprep.mubr.bf16.mxu0 0
      %1269 = vmatmul.mubr.bf16.gmra.mxu0 %v1189
      %v1270 = vpop.f32.mrf.mxu0
      %v1271 = vadd.f32 %v1158, %v1270
      %v1272 = vpop.f32.mrf.mxu0
      %v1273 = vpop.f32.mrf.mxu0
      %v1274 = vadd.f32 %v1158, %v1273
      %v1275 = vpop.f32.mrf.mxu0
      %1276 = vmatprep.mubr.bf16.mxu0 0
      %1277 = vmatmul.mubr.bf16.gmra.mxu0 %v1192
      %v1278 = vpop.f32.mrf.mxu0
      %v1279 = vadd.f32 %v1158, %v1278
      %v1280 = vpop.f32.mrf.mxu0
      %v1281 = vpop.f32.mrf.mxu0
      %v1282 = vadd.f32 %v1158, %v1281
      %v1283 = vpop.f32.mrf.mxu0
      %1284 = vmatprep.mubr.bf16.mxu0 0
      %1285 = vmatmul.mubr.bf16.gmra.mxu0 %v1195
      %v1286 = vpop.f32.mrf.mxu0
      %v1287 = vadd.f32 %v1158, %v1286
      %v1288 = vpop.f32.mrf.mxu0
      %v1289 = vpop.f32.mrf.mxu0
      %v1290 = vadd.f32 %v1158, %v1289
      %v1291 = vpop.f32.mrf.mxu0
      %1292 = vmatprep.mubr.bf16.mxu0 0
      %1293 = vmatmul.mubr.bf16.gmra.mxu0 %v1198
      %v1294 = vpop.f32.mrf.mxu0
      %v1295 = vadd.f32 %v1158, %v1294
      %v1296 = vpop.f32.mrf.mxu0
      %v1297 = vpop.f32.mrf.mxu0
      %v1298 = vadd.f32 %v1158, %v1297
      %v1299 = vpop.f32.mrf.mxu0
      %1300 = vdwg.mxu0
      %s1301 = sld [smem:[#allocation2]]
      %vm1302 = vcmp.ge.f32.partialorder %v1239, 0.0
      %vm1303 = vcmp.ge.f32.partialorder %v1242, 0.0
      %vm1304 = vcmp.ge.f32.partialorder %v1247, 0.0
      %vm1305 = vcmp.ge.f32.partialorder %v1250, 0.0
      %vm1306 = vcmp.ge.f32.partialorder %v1255, 0.0
      %vm1307 = vcmp.ge.f32.partialorder %v1258, 0.0
      %vm1308 = vcmp.ge.f32.partialorder %v1263, 0.0
      %vm1309 = vcmp.ge.f32.partialorder %v1266, 0.0
      %vm1310 = vcmp.ge.f32.partialorder %v1271, 0.0
      %vm1311 = vcmp.ge.f32.partialorder %v1274, 0.0
      %vm1312 = vcmp.ge.f32.partialorder %v1279, 0.0
      %vm1313 = vcmp.ge.f32.partialorder %v1282, 0.0
      %vm1314 = vcmp.ge.f32.partialorder %v1287, 0.0
      %vm1315 = vcmp.ge.f32.partialorder %v1290, 0.0
      %vm1316 = vcmp.ge.f32.partialorder %v1295, 0.0
      %vm1317 = vcmp.ge.f32.partialorder %v1298, 0.0
      %v1318 = vstv %s1301
      %v1319 = vmul.f32 %v1318, %v1239
      %v1320 = vmul.f32 %v1318, %v1242
      %v1321 = vmul.f32 %v1318, %v1247
      %v1322 = vmul.f32 %v1318, %v1250
      %v1323 = vmul.f32 %v1318, %v1255
      %v1324 = vmul.f32 %v1318, %v1258
      %v1325 = vmul.f32 %v1318, %v1263
      %v1326 = vmul.f32 %v1318, %v1266
      %v1327 = vmul.f32 %v1318, %v1271
      %v1328 = vmul.f32 %v1318, %v1274
      %v1329 = vmul.f32 %v1318, %v1279
      %v1330 = vmul.f32 %v1318, %v1282
      %v1331 = vmul.f32 %v1318, %v1287
      %v1332 = vmul.f32 %v1318, %v1290
      %v1333 = vmul.f32 %v1318, %v1295
      %v1334 = vmul.f32 %v1318, %v1298
      %v1335 = vsel %vm1302, %v1239, %v1319
      %v1336 = vsel %vm1303, %v1242, %v1320
      %v1337 = vsel %vm1304, %v1247, %v1321
      %v1338 = vsel %vm1305, %v1250, %v1322
      %v1339 = vsel %vm1306, %v1255, %v1323
      %v1340 = vsel %vm1307, %v1258, %v1324
      %v1341 = vsel %vm1308, %v1263, %v1325
      %v1342 = vsel %vm1309, %v1266, %v1326
      %v1343 = vsel %vm1310, %v1271, %v1327
      %v1344 = vsel %vm1311, %v1274, %v1328
      %v1345 = vsel %vm1312, %v1279, %v1329
      %v1346 = vsel %vm1313, %v1282, %v1330
      %v1347 = vsel %vm1314, %v1287, %v1331
      %v1348 = vsel %vm1315, %v1290, %v1332
      %v1349 = vsel %vm1316, %v1295, %v1333
      %v1350 = vsel %vm1317, %v1298, %v1334
      %1351 = vst.msk [vmem:[%s222] sm:$0xff] %vm1021, %v1335
      %1352 = vst.msk [vmem:[%s222 + $0x8] sm:$0xff] %vm1021, %v1336
      %1353 = vst.msk [vmem:[%s222 + $0x20] sm:$0xff] %vm1021, %v1337
      %1354 = vst.msk [vmem:[%s222 + $0x28] sm:$0xff] %vm1021, %v1338
      %1355 = vst.msk [vmem:[%s222 + $0x40] sm:$0xff] %vm1021, %v1339
      %1356 = vst.msk [vmem:[%s222 + $0x48] sm:$0xff] %vm1021, %v1340
      %1357 = vst.msk [vmem:[%s222 + $0x60] sm:$0xff] %vm1021, %v1341
      %1358 = vst.msk [vmem:[%s222 + $0x68] sm:$0xff] %vm1021, %v1342
      %1359 = vst.msk [vmem:[%s222 + $0x80] sm:$0xff] %vm1021, %v1343
      %1360 = vst.msk [vmem:[%s222 + $0x88] sm:$0xff] %vm1021, %v1344
      %1361 = vst.msk [vmem:[%s222 + $0xa0] sm:$0xff] %vm1021, %v1345
      %1362 = vst.msk [vmem:[%s222 + $0xa8] sm:$0xff] %vm1021, %v1346
      %1363 = vst.msk [vmem:[%s222 + $0xc0] sm:$0xff] %vm1021, %v1347
      %1364 = vst.msk [vmem:[%s222 + $0xc8] sm:$0xff] %vm1021, %v1348
      %1365 = vst.msk [vmem:[%s222 + $0xe0] sm:$0xff] %vm1021, %v1349
      %1366 = vst.msk [vmem:[%s222 + $0xe8] sm:$0xff] %vm1021, %v1350
      %1383 = vrot.lane.b32.xlu0 %v1335, 120
      %v1384 = vpop.permute.xlu0 %1383
      %1385 = vrot.lane.b32.xlu0 %v1336, 120
      %v1386 = vpop.permute.xlu0 %1385
      %1387 = vrot.lane.b32.xlu0 %v1337, 120
      %v1388 = vpop.permute.xlu0 %1387
      %1389 = vrot.lane.b32.xlu0 %v1338, 120
      %v1390 = vpop.permute.xlu0 %1389
      %1391 = vrot.lane.b32.xlu0 %v1339, 120
      %v1392 = vpop.permute.xlu0 %1391
      %1393 = vrot.lane.b32.xlu0 %v1340, 120
      %v1394 = vpop.permute.xlu0 %1393
      %1395 = vrot.lane.b32.xlu0 %v1341, 120
      %v1396 = vpop.permute.xlu0 %1395
      %1397 = vrot.lane.b32.xlu0 %v1342, 120
      %v1398 = vpop.permute.xlu0 %1397
      %1399 = vrot.lane.b32.xlu0 %v1343, 120
      %v1400 = vpop.permute.xlu0 %1399
      %1401 = vrot.lane.b32.xlu0 %v1344, 120
      %v1402 = vpop.permute.xlu0 %1401
      %1403 = vrot.lane.b32.xlu0 %v1345, 120
      %v1404 = vpop.permute.xlu0 %1403
      %1405 = vrot.lane.b32.xlu0 %v1346, 120
      %v1406 = vpop.permute.xlu0 %1405
      %1407 = vrot.lane.b32.xlu0 %v1347, 120
      %v1408 = vpop.permute.xlu0 %1407
      %1409 = vrot.lane.b32.xlu0 %v1348, 120
      %v1410 = vpop.permute.xlu0 %1409
      %1411 = vrot.lane.b32.xlu0 %v1349, 120
      %v1412 = vpop.permute.xlu0 %1411
      %1413 = vrot.lane.b32.xlu0 %v1350, 120
      %v1414 = vpop.permute.xlu0 %1413
      %s1431 = scalar_lea.vmem %s222, 16
      %1432 = vst.msk [vmem:[%s1431] sm:$0xff] %vm1021, %v1384
      %1433 = vst.msk [vmem:[%s1431 + $0x8] sm:$0xff] %vm1021, %v1386
      %1434 = vst.msk [vmem:[%s1431 + $0x20] sm:$0xff] %vm1021, %v1388
      %1435 = vst.msk [vmem:[%s1431 + $0x28] sm:$0xff] %vm1021, %v1390
      %1436 = vst.msk [vmem:[%s1431 + $0x40] sm:$0xff] %vm1021, %v1392
      %1437 = vst.msk [vmem:[%s1431 + $0x48] sm:$0xff] %vm1021, %v1394
      %1438 = vst.msk [vmem:[%s1431 + $0x60] sm:$0xff] %vm1021, %v1396
      %1439 = vst.msk [vmem:[%s1431 + $0x68] sm:$0xff] %vm1021, %v1398
      %1440 = vst.msk [vmem:[%s1431 + $0x80] sm:$0xff] %vm1021, %v1400
      %1441 = vst.msk [vmem:[%s1431 + $0x88] sm:$0xff] %vm1021, %v1402
      %1442 = vst.msk [vmem:[%s1431 + $0xa0] sm:$0xff] %vm1021, %v1404
      %1443 = vst.msk [vmem:[%s1431 + $0xa8] sm:$0xff] %vm1021, %v1406
      %1444 = vst.msk [vmem:[%s1431 + $0xc0] sm:$0xff] %vm1021, %v1408
      %1445 = vst.msk [vmem:[%s1431 + $0xc8] sm:$0xff] %vm1021, %v1410
      %1446 = vst.msk [vmem:[%s1431 + $0xe0] sm:$0xff] %vm1021, %v1412
      %1447 = vst.msk [vmem:[%s1431 + $0xe8] sm:$0xff] %vm1021, %v1414
      %s1448 = smul.u32 8, %s21
      %p1449 = scmp.lt.s32.totalorder %s20, 1
      %s1450 = scalar_select %p1449, %s20, 1
      %p1451 = scmp.lt.s32.totalorder %s1448, 15
      %s1452 = scalar_select %p1451, %s1448, 15
      %s1453 = smul.addr %s1452, 4
      %s1454 = smul.addr %s1450, 64
      %s1455 = sadd.s32 %s1453, %s1454
      %s1456 = smul.addr %s1455, 8
      %s1457 = scalar_lea.vmem %s4, %s1456
      // Predicated region
      $region37: #{tpu_custom_call.1} parent=35 // pred_check
        %p1458 = pneg %p137
      $region38: #{tpu_custom_call.1} parent=35 // pred_check_branch
        %1460 = sbr.rel (%p1458) target = $region40
      $region39: #{tpu_custom_call.1} parent=35 // pred_region
        %s1461 = smul.u32 8, %s21
      $region40: #{tpu_custom_call.1} parent=35 // pred_fallthru
        _
    $region36: #{tpu_custom_call.1} parent=5 // pred_fallthru
      _
    %p1462 = scmp.le.s32.totalorder 2, %s11
    // Predicated region
    $region41: #{tpu_custom_call.1} parent=5 // pred_check
      %p1463 = pneg %p1462
    $region42: #{tpu_custom_call.1} parent=5 // pred_check_branch
      %1465 = sbr.rel (%p1463) target = $region44
    $region43: #{tpu_custom_call.1} parent=5 // pred_region
      %s1466 = ssub.s32 %s11, 2
      // Predicated region
      $region45: #{tpu_custom_call.1} parent=43 // pred_check
        %p1467 = pneg %p143
      $region46: #{tpu_custom_call.1} parent=43 // pred_check_branch
        %1469 = sbr.rel (%p1467) target = $region48
      $region47: #{tpu_custom_call.1} parent=43 // pred_region
        %s1470 = smul.u32 8, %s23
        %p1471 = scmp.lt.s32.totalorder %s22, 1
        %s1472 = scalar_select %p1471, %s22, 1
        %p1473 = scmp.lt.s32.totalorder %s1470, 15
        %s1474 = scalar_select %p1473, %s1470, 15
        %s1475 = smul.addr %s1474, 4
        %s1476 = smul.addr %s1472, 64
        %s1477 = sadd.s32 %s1475, %s1476
        %s1478 = smul.addr %s1477, 8
        %s1479 = scalar_lea.vmem %s4, %s1478
      $region48: #{tpu_custom_call.1} parent=43 // pred_fallthru
        _
    $region44: #{tpu_custom_call.1} parent=5 // pred_fallthru
      _
  $region6: #{tpu_custom_call.1} parent=0 // loop_footer
    %s15 = sadd.s32 1, %s11
  $region7: #{tpu_custom_call.1} parent=0 // loop_footer_branch
    %10 = sbr.rel target = $region3
  $region8: #{tpu_custom_call.1} parent=0 // loop_exit
    _

</llo_original>
